<compile_context>
chip_gen: v7x
topology: tpu7x:2x2x1
jax: 0.10.0
libtpu: 0.0.40
codegen_flags: <defaults>
</compile_context>

<pallas_src>
import jax
import jax.numpy as jnp
from jax.experimental import pallas as pl
from jax.experimental.pallas import tpu as pltpu

N_FEATS = 16                         # `feats` argument of the module
N_HIDDEN = 64                        # self.n_hidden
Y_PAD = ((N_FEATS + 127) // 128) * 128   # lane-dense padded output width (=128)


def lstm_seq_kernel(x_ref, h0_ref, c0_ref,
                    w_ih_ref, w_hh_ref, b_ref,
                    w_fc_ref, b_fc_ref,
                    y_ref, hc_ref,
                    h_sc, c_sc):
    t = pl.program_id(0)
    H = N_HIDDEN

    # Initialize the carried hidden state on the first step.
    @pl.when(t == 0)
    def _():
        h_sc[...] = h0_ref[...]
        c_sc[...] = c0_ref[...]

    x = x_ref[0]          # (1, F)
    h = h_sc[...]         # (1, H)
    c = c_sc[...]         # (1, H)

    # Fused gate pre-activations: one lane-dense (1, 4H) row, gate order i,f,g,o.
    gates = (jnp.dot(x, w_ih_ref[...], preferred_element_type=jnp.float32)
             + jnp.dot(h, w_hh_ref[...], preferred_element_type=jnp.float32)
             + b_ref[...])

    i_g = jax.nn.sigmoid(gates[:, 0 * H:1 * H])
    f_g = jax.nn.sigmoid(gates[:, 1 * H:2 * H])
    g_g = jnp.tanh(gates[:, 2 * H:3 * H])
    o_g = jax.nn.sigmoid(gates[:, 3 * H:4 * H])

    c_new = f_g * c + i_g * g_g
    h_new = o_g * jnp.tanh(c_new)

    h_sc[...] = h_new
    c_sc[...] = c_new

    # fcn: Linear(H -> F) + Sigmoid, computed into a 128-lane padded row
    # (padded weight columns are zero; extra lanes are sliced off in the wrapper).
    y_ref[0] = jax.nn.sigmoid(
        jnp.dot(h_new, w_fc_ref[...], preferred_element_type=jnp.float32)
        + b_fc_ref[...])

    # Pack final (h, c) into one lane-dense (1, 2H)=(1,128) row, written once.
    @pl.when(t == pl.num_programs(0) - 1)
    def _():
        hc_ref[:, 0:H] = h_new
        hc_ref[:, H:2 * H] = c_new


def lstm_forward(xs, h0, c0, w_ih_cat, w_hh_cat, b_cat, w_fc_pad, b_fc_pad):
    """Run T fused LSTM forward steps.

    xs:        (T, F)        sequence of inputs (one per PyTorch forward() call)
    h0, c0:    (1, H)        initial hidden state
    w_ih_cat:  (F, 4H)       fused input->gates weights   (gate order i,f,g,o)
    w_hh_cat:  (H, 4H)       fused hidden->gates weights
    b_cat:     (1, 4H)       fused bias (b_ih + b_hh)
    w_fc_pad:  (H, Y_PAD)    fc weight, zero-padded to 128 lanes
    b_fc_pad:  (1, Y_PAD)    fc bias, zero-padded to 128 lanes
    Returns (ys (T, F), h_final (1, H), c_final (1, H)).
    """
    T = xs.shape[0]
    F, H = N_FEATS, N_HIDDEN
    xs3 = xs.reshape(T, 1, F)   # make the per-step block's trailing dims full-extent

    out_shapes = (
        jax.ShapeDtypeStruct((T, 1, Y_PAD), jnp.float32),   # padded y per step
        jax.ShapeDtypeStruct((1, 2 * H), jnp.float32),      # packed (h, c)
    )

    y_pad, hc = pl.pallas_call(
        lstm_seq_kernel,
        out_shape=out_shapes,
        grid_spec=pltpu.PrefetchScalarGridSpec(
            num_scalar_prefetch=0,
            grid=(T,),
            in_specs=[
                pl.BlockSpec((1, 1, F), lambda t: (t, 0, 0)),      # xs (per step)
                pl.BlockSpec((1, H), lambda t: (0, 0)),            # h0
                pl.BlockSpec((1, H), lambda t: (0, 0)),            # c0
                pl.BlockSpec((F, 4 * H), lambda t: (0, 0)),        # w_ih_cat (resident)
                pl.BlockSpec((H, 4 * H), lambda t: (0, 0)),        # w_hh_cat (resident)
                pl.BlockSpec((1, 4 * H), lambda t: (0, 0)),        # b_cat    (resident)
                pl.BlockSpec((H, Y_PAD), lambda t: (0, 0)),        # w_fc_pad (resident)
                pl.BlockSpec((1, Y_PAD), lambda t: (0, 0)),        # b_fc_pad (resident)
            ],
            out_specs=[
                pl.BlockSpec((1, 1, Y_PAD), lambda t: (t, 0, 0)),  # y per step
                pl.BlockSpec((1, 2 * H), lambda t: (0, 0)),        # final (h, c)
            ],
            scratch_shapes=[
                pltpu.VMEM((1, H), jnp.float32),                   # h carry
                pltpu.VMEM((1, H), jnp.float32),                   # c carry
            ],
        ),
        compiler_params=pltpu.CompilerParams(
            dimension_semantics=("arbitrary",)),                   # sequential carry
    )(xs3, h0, c0, w_ih_cat, w_hh_cat, b_cat, w_fc_pad, b_fc_pad)

    ys = y_pad[:, 0, :F]
    h_final = hc[:, :H]
    c_final = hc[:, H:]
    return ys, h_final, c_final


def reference_forward(xs, h, c, w_ih_g, w_hh_g, b_g, w_fc, b_fc):
    """Pure-JAX reference: T sequential single-step LSTM + fc forwards."""
    ys = []
    for t in range(xs.shape[0]):
        x = xs[t:t + 1]
        pre = [x @ w_ih_g[k] + h @ w_hh_g[k] + b_g[k] for k in range(4)]
        i_g, f_g = jax.nn.sigmoid(pre[0]), jax.nn.sigmoid(pre[1])
        g_g, o_g = jnp.tanh(pre[2]), jax.nn.sigmoid(pre[3])
        c = f_g * c + i_g * g_g
        h = o_g * jnp.tanh(c)
        ys.append(jax.nn.sigmoid(h @ w_fc + b_fc))
    return jnp.concatenate(ys, axis=0), h, c


if __name__ == "__main__":
    T = 8                                   # number of fused forward() calls
    F, H = N_FEATS, N_HIDDEN
    key = jax.random.PRNGKey(0)
    ks = jax.random.split(key, 9)
    bound = 1.0 / (H ** 0.5)                # PyTorch default uniform(-1/sqrt(H), 1/sqrt(H))

    # Per-gate weights (gate order i, f, g, o), pre-transposed vs. PyTorch layout.
    # NOTE: to import real nn.LSTM/nn.Linear weights, transpose + gate-split them
    # and pre-sum b_ih + b_hh exactly as below.
    w_ih_g = jax.random.uniform(ks[0], (4, F, H), jnp.float32, -bound, bound)
    w_hh_g = jax.random.uniform(ks[1], (4, H, H), jnp.float32, -bound, bound)
    b_ih = jax.random.uniform(ks[2], (4, 1, H), jnp.float32, -bound, bound)
    b_hh = jax.random.uniform(ks[3], (4, 1, H), jnp.float32, -bound, bound)
    b_g = b_ih + b_hh
    w_fc = jax.random.uniform(ks[4], (H, F), jnp.float32, -bound, bound)
    b_fc = jax.random.uniform(ks[5], (1, F), jnp.float32, -bound, bound)

    # self.hidden = (torch.rand(1,1,H), torch.randn(1,1,H)) -> flattened to (1,H)
    h0 = jax.random.uniform(ks[6], (1, H), jnp.float32)
    c0 = jax.random.normal(ks[7], (1, H), jnp.float32)

    # Sequence of inputs: each forward() call consumes exactly n_feats values.
    xs = jax.random.normal(ks[8], (T, F), jnp.float32)

    # Fused / lane-dense layouts for the kernel.
    w_ih_cat = jnp.transpose(w_ih_g, (1, 0, 2)).reshape(F, 4 * H)   # (F, 4H)
    w_hh_cat = jnp.transpose(w_hh_g, (1, 0, 2)).reshape(H, 4 * H)   # (H, 4H)
    b_cat = jnp.transpose(b_g, (1, 0, 2)).reshape(1, 4 * H)         # (1, 4H)
    w_fc_pad = jnp.pad(w_fc, ((0, 0), (0, Y_PAD - F)))              # (H, 128)
    b_fc_pad = jnp.pad(b_fc, ((0, 0), (0, Y_PAD - F)))              # (1, 128)

    ys, h_new, c_new = lstm_forward(xs, h0, c0, w_ih_cat, w_hh_cat, b_cat,
                                    w_fc_pad, b_fc_pad)
    jax.block_until_ready((ys, h_new, c_new))

    ys_ref, h_ref, c_ref = reference_forward(xs, h0, c0, w_ih_g, w_hh_g, b_g,
                                             w_fc, b_fc)
    assert ys.shape == (T, F)
    assert jnp.allclose(ys, ys_ref, atol=1e-5)
    assert jnp.allclose(h_new, h_ref, atol=1e-5)
    assert jnp.allclose(c_new, c_ref, atol=1e-5)

    out = ys[-1].reshape(-1)   # last step matches `out = self.fcn(out.view(-1))`
    jax.block_until_ready(out)
    print("KERNEL_OK")
</pallas_src>

<mosaic_0001>
module attributes {stable_mosaic.version = 11 : i64} {
  func.func @lstm_seq_kernel(%arg0: i32, %arg1: memref<1x1x16xf32, #tpu.memory_space<vmem>>, %arg2: memref<1x64xf32, #tpu.memory_space<vmem>>, %arg3: memref<1x64xf32, #tpu.memory_space<vmem>>, %arg4: memref<16x256xf32, #tpu.memory_space<vmem>>, %arg5: memref<64x256xf32, #tpu.memory_space<vmem>>, %arg6: memref<1x256xf32, #tpu.memory_space<vmem>>, %arg7: memref<64x128xf32, #tpu.memory_space<vmem>>, %arg8: memref<1x128xf32, #tpu.memory_space<vmem>>, %arg9: memref<1x1x128xf32, #tpu.memory_space<vmem>>, %arg10: memref<1x128xf32, #tpu.memory_space<vmem>>, %arg11: memref<1x64xf32, #tpu.memory_space<vmem>>, %arg12: memref<1x64xf32, #tpu.memory_space<vmem>>) attributes {dimension_semantics = [#tpu.dimension_semantics<arbitrary>], iteration_bounds = array<i64: 8>, scalar_prefetch = 0 : i64, scratch_operands = 2 : i64, tpu.core_type = #tpu.core_type<tc>, window_params = [{transform_indices = @transform_0, window_bounds = array<i64: 1, 1, 16>}, {pipeline_mode = #tpu.pipeline_mode<synchronous>, transform_indices = @transform_1, window_bounds = array<i64: 1, 64>}, {pipeline_mode = #tpu.pipeline_mode<synchronous>, transform_indices = @transform_2, window_bounds = array<i64: 1, 64>}, {pipeline_mode = #tpu.pipeline_mode<synchronous>, transform_indices = @transform_3, window_bounds = array<i64: 16, 256>}, {pipeline_mode = #tpu.pipeline_mode<synchronous>, transform_indices = @transform_4, window_bounds = array<i64: 64, 256>}, {pipeline_mode = #tpu.pipeline_mode<synchronous>, transform_indices = @transform_5, window_bounds = array<i64: 1, 256>}, {pipeline_mode = #tpu.pipeline_mode<synchronous>, transform_indices = @transform_6, window_bounds = array<i64: 64, 128>}, {pipeline_mode = #tpu.pipeline_mode<synchronous>, transform_indices = @transform_7, window_bounds = array<i64: 1, 128>}, {transform_indices = @transform_8, window_bounds = array<i64: 1, 1, 128>}, {pipeline_mode = #tpu.pipeline_mode<synchronous>, transform_indices = @transform_9, window_bounds = array<i64: 1, 128>}]} {
    %c0_i32 = arith.constant 0 : i32
    %0 = arith.cmpi eq, %arg0, %c0_i32 : i32
    %1 = arith.extui %0 : i1 to i32
    %c0_i32_0 = arith.constant 0 : i32
    %2 = arith.cmpi ne, %1, %c0_i32_0 : i32
    scf.if %2 {
      %c0_31 = arith.constant 0 : index
      %c0_32 = arith.constant 0 : index
      %56 = vector.load %arg2[%c0_31, %c0_32] : memref<1x64xf32, #tpu.memory_space<vmem>>, vector<1x64xf32>
      %c0_33 = arith.constant 0 : index
      %c0_34 = arith.constant 0 : index
      %57 = vector.load %arg11[%c0_33, %c0_34] : memref<1x64xf32, #tpu.memory_space<vmem>>, vector<1x64xf32>
      tpu.vector_store %arg11[%c0_33, %c0_34], %56 {strides = array<i32>} : memref<1x64xf32, #tpu.memory_space<vmem>>, vector<1x64xf32>,
      %c0_35 = arith.constant 0 : index
      %c0_36 = arith.constant 0 : index
      %58 = vector.load %arg3[%c0_35, %c0_36] : memref<1x64xf32, #tpu.memory_space<vmem>>, vector<1x64xf32>
      %c0_37 = arith.constant 0 : index
      %c0_38 = arith.constant 0 : index
      %59 = vector.load %arg12[%c0_37, %c0_38] : memref<1x64xf32, #tpu.memory_space<vmem>>, vector<1x64xf32>
      tpu.vector_store %arg12[%c0_37, %c0_38], %58 {strides = array<i32>} : memref<1x64xf32, #tpu.memory_space<vmem>>, vector<1x64xf32>,
    } else {
    }
    %c0 = arith.constant 0 : index
    %c0_1 = arith.constant 0 : index
    %c0_2 = arith.constant 0 : index
    %3 = vector.load %arg1[%c0, %c0_1, %c0_2] : memref<1x1x16xf32, #tpu.memory_space<vmem>>, vector<1x1x16xf32>
    %4 = vector.shape_cast %3 : vector<1x1x16xf32> to vector<1x16xf32>
    %c0_3 = arith.constant 0 : index
    %c0_4 = arith.constant 0 : index
    %5 = vector.load %arg11[%c0_3, %c0_4] : memref<1x64xf32, #tpu.memory_space<vmem>>, vector<1x64xf32>
    %c0_5 = arith.constant 0 : index
    %c0_6 = arith.constant 0 : index
    %6 = vector.load %arg12[%c0_5, %c0_6] : memref<1x64xf32, #tpu.memory_space<vmem>>, vector<1x64xf32>
    %c0_7 = arith.constant 0 : index
    %c0_8 = arith.constant 0 : index
    %7 = vector.load %arg4[%c0_7, %c0_8] : memref<16x256xf32, #tpu.memory_space<vmem>>, vector<16x256xf32>
    %cst = arith.constant dense<0.000000e+00> : vector<1x256xf32>
    %8 = tpu.matmul %4, %7, %cst {dimension_numbers = #tpu.dot_dimension_numbers<[1], [0], [0], [1], [0, 0, 1, 1], [], []>} : vector<1x16xf32>, vector<16x256xf32>, vector<1x256xf32> -> vector<1x256xf32>
    %c0_9 = arith.constant 0 : index
    %c0_10 = arith.constant 0 : index
    %9 = vector.load %arg5[%c0_9, %c0_10] : memref<64x256xf32, #tpu.memory_space<vmem>>, vector<64x256xf32>
    %cst_11 = arith.constant dense<0.000000e+00> : vector<1x256xf32>
    %10 = tpu.matmul %5, %9, %cst_11 {dimension_numbers = #tpu.dot_dimension_numbers<[1], [0], [0], [1], [0, 0, 1, 1], [], []>} : vector<1x64xf32>, vector<64x256xf32>, vector<1x256xf32> -> vector<1x256xf32>
    %11 = arith.addf %8, %10 : vector<1x256xf32>
    %c0_12 = arith.constant 0 : index
    %c0_13 = arith.constant 0 : index
    %12 = vector.load %arg6[%c0_12, %c0_13] : memref<1x256xf32, #tpu.memory_space<vmem>>, vector<1x256xf32>
    %13 = arith.addf %11, %12 : vector<1x256xf32>
    %14 = vector.extract_strided_slice %13 {offsets = [0, 0], sizes = [1, 64], strides = [1, 1]} : vector<1x256xf32> to vector<1x64xf32>
    %15 = arith.negf %14 : vector<1x64xf32>
    %16 = math.exp %15 : vector<1x64xf32>
    %cst_14 = arith.constant 1.000000e+00 : f32
    %17 = vector.broadcast %cst_14 : f32 to vector<1x64xf32>
    %18 = arith.addf %17, %16 : vector<1x64xf32>
    %19 = arith.divf %17, %18 : vector<1x64xf32>
    %20 = vector.extract_strided_slice %13 {offsets = [0, 64], sizes = [1, 64], strides = [1, 1]} : vector<1x256xf32> to vector<1x64xf32>
    %21 = arith.negf %20 : vector<1x64xf32>
    %22 = math.exp %21 : vector<1x64xf32>
    %cst_15 = arith.constant 1.000000e+00 : f32
    %23 = vector.broadcast %cst_15 : f32 to vector<1x64xf32>
    %24 = arith.addf %23, %22 : vector<1x64xf32>
    %25 = arith.divf %23, %24 : vector<1x64xf32>
    %26 = vector.extract_strided_slice %13 {offsets = [0, 128], sizes = [1, 64], strides = [1, 1]} : vector<1x256xf32> to vector<1x64xf32>
    %27 = math.tanh %26 : vector<1x64xf32>
    %28 = vector.extract_strided_slice %13 {offsets = [0, 192], sizes = [1, 64], strides = [1, 1]} : vector<1x256xf32> to vector<1x64xf32>
    %29 = arith.negf %28 : vector<1x64xf32>
    %30 = math.exp %29 : vector<1x64xf32>
    %cst_16 = arith.constant 1.000000e+00 : f32
    %31 = vector.broadcast %cst_16 : f32 to vector<1x64xf32>
    %32 = arith.addf %31, %30 : vector<1x64xf32>
    %33 = arith.divf %31, %32 : vector<1x64xf32>
    %34 = arith.mulf %25, %6 : vector<1x64xf32>
    %35 = arith.mulf %19, %27 : vector<1x64xf32>
    %36 = arith.addf %34, %35 : vector<1x64xf32>
    %37 = math.tanh %36 : vector<1x64xf32>
    %38 = arith.mulf %33, %37 : vector<1x64xf32>
    %c0_17 = arith.constant 0 : index
    %c0_18 = arith.constant 0 : index
    %39 = vector.load %arg11[%c0_17, %c0_18] : memref<1x64xf32, #tpu.memory_space<vmem>>, vector<1x64xf32>
    tpu.vector_store %arg11[%c0_17, %c0_18], %38 {strides = array<i32>} : memref<1x64xf32, #tpu.memory_space<vmem>>, vector<1x64xf32>,
    %c0_19 = arith.constant 0 : index
    %c0_20 = arith.constant 0 : index
    %40 = vector.load %arg12[%c0_19, %c0_20] : memref<1x64xf32, #tpu.memory_space<vmem>>, vector<1x64xf32>
    tpu.vector_store %arg12[%c0_19, %c0_20], %36 {strides = array<i32>} : memref<1x64xf32, #tpu.memory_space<vmem>>, vector<1x64xf32>,
    %c0_21 = arith.constant 0 : index
    %c0_22 = arith.constant 0 : index
    %41 = vector.load %arg7[%c0_21, %c0_22] : memref<64x128xf32, #tpu.memory_space<vmem>>, vector<64x128xf32>
    %cst_23 = arith.constant dense<0.000000e+00> : vector<1x128xf32>
    %42 = tpu.matmul %38, %41, %cst_23 {dimension_numbers = #tpu.dot_dimension_numbers<[1], [0], [0], [1], [0, 0, 1, 1], [], []>} : vector<1x64xf32>, vector<64x128xf32>, vector<1x128xf32> -> vector<1x128xf32>
    %c0_24 = arith.constant 0 : index
    %c0_25 = arith.constant 0 : index
    %43 = vector.load %arg8[%c0_24, %c0_25] : memref<1x128xf32, #tpu.memory_space<vmem>>, vector<1x128xf32>
    %44 = arith.addf %42, %43 : vector<1x128xf32>
    %45 = arith.negf %44 : vector<1x128xf32>
    %46 = math.exp %45 : vector<1x128xf32>
    %cst_26 = arith.constant 1.000000e+00 : f32
    %47 = vector.broadcast %cst_26 : f32 to vector<1x128xf32>
    %48 = arith.addf %47, %46 : vector<1x128xf32>
    %49 = arith.divf %47, %48 : vector<1x128xf32>
    %c0_27 = arith.constant 0 : index
    %c0_28 = arith.constant 0 : index
    %c0_29 = arith.constant 0 : index
    %50 = vector.load %arg9[%c0_27, %c0_28, %c0_29] : memref<1x1x128xf32, #tpu.memory_space<vmem>>, vector<1x1x128xf32>
    %51 = vector.shape_cast %50 : vector<1x1x128xf32> to vector<1x128xf32>
    %52 = vector.shape_cast %49 : vector<1x128xf32> to vector<1x1x128xf32>
    tpu.vector_store %arg9[%c0_27, %c0_28, %c0_29], %52 {strides = array<i32>} : memref<1x1x128xf32, #tpu.memory_space<vmem>>, vector<1x1x128xf32>,
    %c7_i32 = arith.constant 7 : i32
    %53 = arith.cmpi eq, %arg0, %c7_i32 : i32
    %54 = arith.extui %53 : i1 to i32
    %c0_i32_30 = arith.constant 0 : i32
    %55 = arith.cmpi ne, %54, %c0_i32_30 : i32
    scf.if %55 {
      %c0_31 = arith.constant 0 : index
      %c0_32 = arith.constant 0 : index
      %56 = vector.load %arg10[%c0_31, %c0_32] : memref<1x128xf32, #tpu.memory_space<vmem>>, vector<1x64xf32>
      tpu.vector_store %arg10[%c0_31, %c0_32], %38 {strides = array<i32>} : memref<1x128xf32, #tpu.memory_space<vmem>>, vector<1x64xf32>,
      %c0_33 = arith.constant 0 : index
      %c64 = arith.constant 64 : index
      %57 = vector.load %arg10[%c0_33, %c64] : memref<1x128xf32, #tpu.memory_space<vmem>>, vector<1x64xf32>
      tpu.vector_store %arg10[%c0_33, %c64], %36 {strides = array<i32>} : memref<1x128xf32, #tpu.memory_space<vmem>>, vector<1x64xf32>,
    } else {
    }
    return
  }
  func.func @transform_0(%arg0: i32) -> (i32, i32, i32) {
    %c0_i32 = arith.constant 0 : i32
    %c0_i32_0 = arith.constant 0 : i32
    %c0_i32_1 = arith.constant 0 : i32
    return %arg0, %c0_i32, %c0_i32_0 : i32, i32, i32
  }
  func.func @transform_1(%arg0: i32) -> (i32, i32) {
    %c0_i32 = arith.constant 0 : i32
    %c0_i32_0 = arith.constant 0 : i32
    %c0_i32_1 = arith.constant 0 : i32
    return %c0_i32, %c0_i32_0 : i32, i32
  }
  func.func @transform_2(%arg0: i32) -> (i32, i32) {
    %c0_i32 = arith.constant 0 : i32
    %c0_i32_0 = arith.constant 0 : i32
    %c0_i32_1 = arith.constant 0 : i32
    return %c0_i32, %c0_i32_0 : i32, i32
  }
  func.func @transform_3(%arg0: i32) -> (i32, i32) {
    %c0_i32 = arith.constant 0 : i32
    %c0_i32_0 = arith.constant 0 : i32
    %c0_i32_1 = arith.constant 0 : i32
    return %c0_i32, %c0_i32_0 : i32, i32
  }
  func.func @transform_4(%arg0: i32) -> (i32, i32) {
    %c0_i32 = arith.constant 0 : i32
    %c0_i32_0 = arith.constant 0 : i32
    %c0_i32_1 = arith.constant 0 : i32
    return %c0_i32, %c0_i32_0 : i32, i32
  }
  func.func @transform_5(%arg0: i32) -> (i32, i32) {
    %c0_i32 = arith.constant 0 : i32
    %c0_i32_0 = arith.constant 0 : i32
    %c0_i32_1 = arith.constant 0 : i32
    return %c0_i32, %c0_i32_0 : i32, i32
  }
  func.func @transform_6(%arg0: i32) -> (i32, i32) {
    %c0_i32 = arith.constant 0 : i32
    %c0_i32_0 = arith.constant 0 : i32
    %c0_i32_1 = arith.constant 0 : i32
    return %c0_i32, %c0_i32_0 : i32, i32
  }
  func.func @transform_7(%arg0: i32) -> (i32, i32) {
    %c0_i32 = arith.constant 0 : i32
    %c0_i32_0 = arith.constant 0 : i32
    %c0_i32_1 = arith.constant 0 : i32
    return %c0_i32, %c0_i32_0 : i32, i32
  }
  func.func @transform_8(%arg0: i32) -> (i32, i32, i32) {
    %c0_i32 = arith.constant 0 : i32
    %c0_i32_0 = arith.constant 0 : i32
    %c0_i32_1 = arith.constant 0 : i32
    return %arg0, %c0_i32, %c0_i32_0 : i32, i32, i32
  }
  func.func @transform_9(%arg0: i32) -> (i32, i32) {
    %c0_i32 = arith.constant 0 : i32
    %c0_i32_0 = arith.constant 0 : i32
    %c0_i32_1 = arith.constant 0 : i32
    return %c0_i32, %c0_i32_0 : i32, i32
  }
}

</mosaic_0001>

<llo_original>
// kernel: tpu_custom_call.1
$region0: #{tpu_custom_call.1}
  #allocation0 [shape = 'u32[]', space=smem, size = 0x4, offset = 0x4, fixed_abs, tag = 'smem constant byte address 0x4 - core index']
  #allocation1 [shape = 'u32[144,128]{1,0:T(1,128)}', space=vmem, size = 0x12000, scoped, tag = 'internal scratch']
  #allocation2 [shape = 'f32[1,64]{1,0:T(1,128)}', space=vmem, size = 0x200, scoped, tag = 'scratch operand']
  #allocation3 [shape = 'f32[1,64]{1,0:T(1,128)}', space=vmem, size = 0x200, scoped, tag = 'scratch operand']
  %s0 = inlined_call_operand.hbm [shape: f32[8,1,16], index: 0, kind: input, shape index: {}]
  %s1 = inlined_call_operand.vmem [shape: f32[1,64], index: 1, kind: input, shape index: {}]
  %s2 = inlined_call_operand.vmem [shape: f32[1,64], index: 2, kind: input, shape index: {}]
  %s3 = inlined_call_operand.hbm [shape: f32[16,256], index: 3, kind: input, shape index: {}]
  %s4 = inlined_call_operand.hbm [shape: f32[64,256], index: 4, kind: input, shape index: {}]
  %s5 = inlined_call_operand.vmem [shape: f32[1,256], index: 5, kind: input, shape index: {}]
  %s6 = inlined_call_operand.hbm [shape: f32[64,128], index: 6, kind: input, shape index: {}]
  %s7 = inlined_call_operand.vmem [shape: f32[1,128], index: 7, kind: input, shape index: {}]
  %s8 = inlined_call_operand.hbm [shape: f32[8,1,128], index: 8, kind: output, shape index: {0}]
  %s9 = inlined_call_operand.hbm [shape: f32[1,128], index: 9, kind: output, shape index: {1}]
  %10 = xla_tuple %s8, %s9
  %s11 = sld [smem:[#allocation0]]
  $region97: #{tpu_custom_call.1} parent=0
    _
  %s13 = ssub.s32 1, %s11
  %s14 = scalar_select 0, %s13, %s11
  $region1: #{tpu_custom_call.1} parent=0
    #allocation4 [shape = 'u8[1024]{0}', space=vmem, size = 0x400, scoped, tag = 'input window, operand 0']
    #allocation5 [shape = 's32[2]{0}', space=sflag, size = 0x8, scoped, tag = 'scoped memory for tpu_custom_call.1']
    #allocation6 [shape = 's32[2]{0}', space=sflag, size = 0x8, scoped, tag = 'scoped memory for tpu_custom_call.1']
    #allocation7 [shape = 'u8[16384]{0}', space=vmem, size = 0x4000, scoped, tag = 'input window, operand 3, single buffered']
    #allocation8 [shape = 's32[1]{0}', space=sflag, size = 0x4, scoped, tag = 'scoped memory for tpu_custom_call.1']
    #allocation9 [shape = 'u8[65536]{0}', space=vmem, size = 0x10000, scoped, tag = 'input window, operand 4, single buffered']
    #allocation10 [shape = 'u8[32768]{0}', space=vmem, size = 0x8000, scoped, tag = 'input window, operand 6, single buffered']
    #allocation11 [shape = 's32[1]{0}', space=sflag, size = 0x4, scoped, tag = 'scoped memory for tpu_custom_call.1']
    #allocation12 [shape = 'u8[1024]{0}', space=vmem, size = 0x400, scoped, tag = 'output window, operand 0']
    #allocation13 [shape = 'u8[512]{0}', space=vmem, size = 0x400, scoped, tag = 'output window, operand 1, single buffered']
    #allocation14 [shape = 's32[1]{0}', space=sflag, size = 0x4, scoped, tag = 'scoped memory for tpu_custom_call.1']
    %15 = vsyncpa [#allocation5], 0
    %s16 = scalar_lea.sflag [#allocation5], 1
    %17 = vsyncpa %s16, 0
    %18 = vsyncpa [#allocation8], 0
    %19 = vsyncpa [#allocation11], 0
    %20 = vsyncpa [#allocation6], 0
    %s21 = scalar_lea.sflag [#allocation6], 1
    %22 = vsyncpa %s21, 0
    %23 = vsyncpa [#allocation14], 0
    loop: start=0, step=1, limit=10
    $region2: #{tpu_custom_call.1} parent=1 // loop_pre_header
      _
    $region3: #{tpu_custom_call.1} parent=1 // loop_header
      %s25 = sphi 0, %s29
      %p26 = scmp.ge.s32.totalorder %s25, 10
      %s35 = sphi 0, %s37
      %s38 = sphi 0, %s35
      %s39 = sphi 0, %s38
      %s55 = sphi 0, %s39
      %s59 = sphi 0, %s59
      %s61 = sphi 0, %s59
      %s62 = sphi 0, %s61
      %s76 = sphi 0, %s62
      %s80 = sphi 0, %s80
      %s82 = sphi 0, %s80
      %s83 = sphi 0, %s82
      %s97 = sphi 0, %s83
      %s101 = sphi 0, %s101
      %s103 = sphi 0, %s101
      %s104 = sphi 0, %s103
      %s118 = sphi 0, %s104
      %s122 = sphi 0, %s122
      %s124 = sphi 0, %s122
      %s125 = sphi 0, %s124
      %s139 = sphi 0, %s125
      %s143 = sphi 0, %s143
      %s145 = sphi 0, %s143
      %s146 = sphi 0, %s145
      %s160 = sphi 0, %s146
      %s164 = sphi 0, %s164
      %s166 = sphi 0, %s164
      %s167 = sphi 0, %s166
      %s181 = sphi 0, %s167
      %s185 = sphi 0, %s185
      %s187 = sphi 0, %s185
      %s188 = sphi 0, %s187
      %s202 = sphi 0, %s188
      %s208 = sphi 0, %s210
      %s211 = sphi 0, %s208
      %s212 = sphi 0, %s211
      %s228 = sphi 0, %s212
      %s232 = sphi 0, %s232
      %s234 = sphi 0, %s232
      %s235 = sphi 0, %s234
      %s249 = sphi 0, %s235
    $region4: #{tpu_custom_call.1} parent=1 // loop_header_branch
      %28 = sbr.rel (%p26) target = $region8
    $region5: #{tpu_custom_call.1} parent=1 // loop_body
      %s30 = ssub.s32 %s25, 1
      %s31 = ssub.s32 %s25, 2
      %s32 = sadd.s32 %s25, 1
      %s33 = ssub.s32 %s25, %s32
      %p34 = scmp.eq.s32.totalorder %s33, 0
      %s36 = sadd.s32 %s35, 1
      %s37 = scalar_select %p34, %s35, %s36
      %p40 = pneg %p34
      %p41 = scmp.eq.s32.totalorder %s25, 7
      %p42 = por %p40, %p41
      %p43 = scmp.ne.s32.totalorder %s35, %s38
      %p44 = scmp.eq.s32.totalorder %s25, 0
      %p45 = por %p43, %p44
      %p46 = scmp.ne.s32.totalorder %s35, %s38
      %p47 = scmp.eq.s32.totalorder %s30, 7
      %p48 = por %p46, %p47
      %p49 = scmp.ne.s32.totalorder %s38, %s39
      %p50 = scmp.eq.s32.totalorder %s30, 0
      %p51 = por %p49, %p50
      %p52 = scmp.ne.s32.totalorder %s38, %s39
      %p53 = scmp.eq.s32.totalorder %s31, 7
      %p54 = por %p52, %p53
      %p56 = scmp.ne.s32.totalorder %s39, %s55
      %p57 = scmp.eq.s32.totalorder %s31, 0
      %p58 = por %p56, %p57
      %s60 = sadd.s32 %s59, 1
      %p63 = scmp.eq.s32.totalorder %s25, 7
      %p64 = scmp.ne.s32.totalorder %s59, %s61
      %p65 = scmp.eq.s32.totalorder %s25, 0
      %p66 = por %p64, %p65
      %p67 = scmp.ne.s32.totalorder %s59, %s61
      %p68 = scmp.eq.s32.totalorder %s30, 7
      %p69 = por %p67, %p68
      %p70 = scmp.ne.s32.totalorder %s61, %s62
      %p71 = scmp.eq.s32.totalorder %s30, 0
      %p72 = por %p70, %p71
      %p73 = scmp.ne.s32.totalorder %s61, %s62
      %p74 = scmp.eq.s32.totalorder %s31, 7
      %p75 = por %p73, %p74
      %p77 = scmp.ne.s32.totalorder %s62, %s76
      %p78 = scmp.eq.s32.totalorder %s31, 0
      %p79 = por %p77, %p78
      %s81 = sadd.s32 %s80, 1
      %p84 = scmp.eq.s32.totalorder %s25, 7
      %p85 = scmp.ne.s32.totalorder %s80, %s82
      %p86 = scmp.eq.s32.totalorder %s25, 0
      %p87 = por %p85, %p86
      %p88 = scmp.ne.s32.totalorder %s80, %s82
      %p89 = scmp.eq.s32.totalorder %s30, 7
      %p90 = por %p88, %p89
      %p91 = scmp.ne.s32.totalorder %s82, %s83
      %p92 = scmp.eq.s32.totalorder %s30, 0
      %p93 = por %p91, %p92
      %p94 = scmp.ne.s32.totalorder %s82, %s83
      %p95 = scmp.eq.s32.totalorder %s31, 7
      %p96 = por %p94, %p95
      %p98 = scmp.ne.s32.totalorder %s83, %s97
      %p99 = scmp.eq.s32.totalorder %s31, 0
      %p100 = por %p98, %p99
      %s102 = sadd.s32 %s101, 1
      %p105 = scmp.eq.s32.totalorder %s25, 7
      %p106 = scmp.ne.s32.totalorder %s101, %s103
      %p107 = scmp.eq.s32.totalorder %s25, 0
      %p108 = por %p106, %p107
      %p109 = scmp.ne.s32.totalorder %s101, %s103
      %p110 = scmp.eq.s32.totalorder %s30, 7
      %p111 = por %p109, %p110
      %p112 = scmp.ne.s32.totalorder %s103, %s104
      %p113 = scmp.eq.s32.totalorder %s30, 0
      %p114 = por %p112, %p113
      %p115 = scmp.ne.s32.totalorder %s103, %s104
      %p116 = scmp.eq.s32.totalorder %s31, 7
      %p117 = por %p115, %p116
      %p119 = scmp.ne.s32.totalorder %s104, %s118
      %p120 = scmp.eq.s32.totalorder %s31, 0
      %p121 = por %p119, %p120
      %s123 = sadd.s32 %s122, 1
      %p126 = scmp.eq.s32.totalorder %s25, 7
      %p127 = scmp.ne.s32.totalorder %s122, %s124
      %p128 = scmp.eq.s32.totalorder %s25, 0
      %p129 = por %p127, %p128
      %p130 = scmp.ne.s32.totalorder %s122, %s124
      %p131 = scmp.eq.s32.totalorder %s30, 7
      %p132 = por %p130, %p131
      %p133 = scmp.ne.s32.totalorder %s124, %s125
      %p134 = scmp.eq.s32.totalorder %s30, 0
      %p135 = por %p133, %p134
      %p136 = scmp.ne.s32.totalorder %s124, %s125
      %p137 = scmp.eq.s32.totalorder %s31, 7
      %p138 = por %p136, %p137
      %p140 = scmp.ne.s32.totalorder %s125, %s139
      %p141 = scmp.eq.s32.totalorder %s31, 0
      %p142 = por %p140, %p141
      %s144 = sadd.s32 %s143, 1
      %p147 = scmp.eq.s32.totalorder %s25, 7
      %p148 = scmp.ne.s32.totalorder %s143, %s145
      %p149 = scmp.eq.s32.totalorder %s25, 0
      %p150 = por %p148, %p149
      %p151 = scmp.ne.s32.totalorder %s143, %s145
      %p152 = scmp.eq.s32.totalorder %s30, 7
      %p153 = por %p151, %p152
      %p154 = scmp.ne.s32.totalorder %s145, %s146
      %p155 = scmp.eq.s32.totalorder %s30, 0
      %p156 = por %p154, %p155
      %p157 = scmp.ne.s32.totalorder %s145, %s146
      %p158 = scmp.eq.s32.totalorder %s31, 7
      %p159 = por %p157, %p158
      %p161 = scmp.ne.s32.totalorder %s146, %s160
      %p162 = scmp.eq.s32.totalorder %s31, 0
      %p163 = por %p161, %p162
      %s165 = sadd.s32 %s164, 1
      %p168 = scmp.eq.s32.totalorder %s25, 7
      %p169 = scmp.ne.s32.totalorder %s164, %s166
      %p170 = scmp.eq.s32.totalorder %s25, 0
      %p171 = por %p169, %p170
      %p172 = scmp.ne.s32.totalorder %s164, %s166
      %p173 = scmp.eq.s32.totalorder %s30, 7
      %p174 = por %p172, %p173
      %p175 = scmp.ne.s32.totalorder %s166, %s167
      %p176 = scmp.eq.s32.totalorder %s30, 0
      %p177 = por %p175, %p176
      %p178 = scmp.ne.s32.totalorder %s166, %s167
      %p179 = scmp.eq.s32.totalorder %s31, 7
      %p180 = por %p178, %p179
      %p182 = scmp.ne.s32.totalorder %s167, %s181
      %p183 = scmp.eq.s32.totalorder %s31, 0
      %p184 = por %p182, %p183
      %s186 = sadd.s32 %s185, 1
      %p189 = scmp.eq.s32.totalorder %s25, 7
      %p190 = scmp.ne.s32.totalorder %s185, %s187
      %p191 = scmp.eq.s32.totalorder %s25, 0
      %p192 = por %p190, %p191
      %p193 = scmp.ne.s32.totalorder %s185, %s187
      %p194 = scmp.eq.s32.totalorder %s30, 7
      %p195 = por %p193, %p194
      %p196 = scmp.ne.s32.totalorder %s187, %s188
      %p197 = scmp.eq.s32.totalorder %s30, 0
      %p198 = por %p196, %p197
      %p199 = scmp.ne.s32.totalorder %s187, %s188
      %p200 = scmp.eq.s32.totalorder %s31, 7
      %p201 = por %p199, %p200
      %p203 = scmp.ne.s32.totalorder %s188, %s202
      %p204 = scmp.eq.s32.totalorder %s31, 0
      %p205 = por %p203, %p204
      %s206 = ssub.s32 %s25, %s32
      %p207 = scmp.eq.s32.totalorder %s206, 0
      %s209 = sadd.s32 %s208, 1
      %s210 = scalar_select %p207, %s208, %s209
      %p213 = pneg %p207
      %p214 = scmp.eq.s32.totalorder %s25, 7
      %p215 = por %p213, %p214
      %p216 = scmp.ne.s32.totalorder %s208, %s211
      %p217 = scmp.eq.s32.totalorder %s25, 0
      %p218 = por %p216, %p217
      %p219 = scmp.ne.s32.totalorder %s208, %s211
      %p220 = scmp.eq.s32.totalorder %s30, 7
      %p221 = por %p219, %p220
      %p222 = scmp.ne.s32.totalorder %s211, %s212
      %p223 = scmp.eq.s32.totalorder %s30, 0
      %p224 = por %p222, %p223
      %p225 = scmp.ne.s32.totalorder %s211, %s212
      %p226 = scmp.eq.s32.totalorder %s31, 7
      %p227 = por %p225, %p226
      %p229 = scmp.ne.s32.totalorder %s212, %s228
      %p230 = scmp.eq.s32.totalorder %s31, 0
      %p231 = por %p229, %p230
      %s233 = sadd.s32 %s232, 1
      %p236 = scmp.eq.s32.totalorder %s25, 7
      %p237 = scmp.ne.s32.totalorder %s232, %s234
      %p238 = scmp.eq.s32.totalorder %s25, 0
      %p239 = por %p237, %p238
      %p240 = scmp.ne.s32.totalorder %s232, %s234
      %p241 = scmp.eq.s32.totalorder %s30, 7
      %p242 = por %p240, %p241
      %p243 = scmp.ne.s32.totalorder %s234, %s235
      %p244 = scmp.eq.s32.totalorder %s30, 0
      %p245 = por %p243, %p244
      %p246 = scmp.ne.s32.totalorder %s234, %s235
      %p247 = scmp.eq.s32.totalorder %s31, 7
      %p248 = por %p246, %p247
      %p250 = scmp.ne.s32.totalorder %s235, %s249
      %p251 = scmp.eq.s32.totalorder %s31, 0
      %p252 = por %p250, %p251
      %p253 = scmp.le.s32.totalorder 1, %s25
      %p254 = scmp.lt.s32.totalorder %s25, 9
      %p255 = pnand %p253, %p254
      %p256 = pneg %p255
      // Predicated region
      $region9: #{tpu_custom_call.1} parent=5 // pred_check
        _
      $region10: #{tpu_custom_call.1} parent=5 // pred_check_branch
        %258 = sbr.rel (%p255) target = $region12
      $region11: #{tpu_custom_call.1} parent=5 // pred_region
        %s259 = ssub.s32 %s25, 1
        // Predicated region
        $region13: #{tpu_custom_call.1} parent=11 // pred_check
          %p260 = pneg %p72
        $region14: #{tpu_custom_call.1} parent=11 // pred_check_branch
          %262 = sbr.rel (%p260) target = $region16
        $region15: #{tpu_custom_call.1} parent=11 // pred_region
          _
        $region16: #{tpu_custom_call.1} parent=11 // pred_fallthru
          _
        // Predicated region
        $region17: #{tpu_custom_call.1} parent=11 // pred_check
          %p263 = pneg %p93
        $region18: #{tpu_custom_call.1} parent=11 // pred_check_branch
          %265 = sbr.rel (%p263) target = $region20
        $region19: #{tpu_custom_call.1} parent=11 // pred_region
          _
        $region20: #{tpu_custom_call.1} parent=11 // pred_fallthru
          _
        // Predicated region
        $region21: #{tpu_custom_call.1} parent=11 // pred_check
          %p266 = pneg %p114
        $region22: #{tpu_custom_call.1} parent=11 // pred_check_branch
          %268 = sbr.rel (%p266) target = $region24
        $region23: #{tpu_custom_call.1} parent=11 // pred_region
          %s270 = ssub.s32 512, 512
          %271 = vsyncadd [#allocation8], %s270
          %s272 = sshll.u32 [#allocation7], 4
          %s273 = int_to_ptr.vmem [resolvable:$true] %s272
          %278 = dma.hbm_to_vmem [thread:$0]  %s3, 512, %s273, [#allocation8], 256, 256, 16
        $region24: #{tpu_custom_call.1} parent=11 // pred_fallthru
          _
        // Predicated region
        $region25: #{tpu_custom_call.1} parent=11 // pred_check
          %p279 = pneg %p135
        $region26: #{tpu_custom_call.1} parent=11 // pred_check_branch
          %281 = sbr.rel (%p279) target = $region28
        $region27: #{tpu_custom_call.1} parent=11 // pred_region
          %s283 = ssub.s32 2048, 2048
          %284 = vsyncadd [#allocation8], %s283
          %s285 = sshll.u32 [#allocation9], 4
          %s286 = int_to_ptr.vmem [resolvable:$true] %s285
          %291 = dma.hbm_to_vmem [thread:$0]  %s4, 2048, %s286, [#allocation8], 256, 256, 16
        $region28: #{tpu_custom_call.1} parent=11 // pred_fallthru
          _
        // Predicated region
        $region29: #{tpu_custom_call.1} parent=11 // pred_check
          %p292 = pneg %p156
        $region30: #{tpu_custom_call.1} parent=11 // pred_check_branch
          %294 = sbr.rel (%p292) target = $region32
        $region31: #{tpu_custom_call.1} parent=11 // pred_region
          _
        $region32: #{tpu_custom_call.1} parent=11 // pred_fallthru
          _
        // Predicated region
        $region33: #{tpu_custom_call.1} parent=11 // pred_check
          %p295 = pneg %p177
        $region34: #{tpu_custom_call.1} parent=11 // pred_check_branch
          %297 = sbr.rel (%p295) target = $region36
        $region35: #{tpu_custom_call.1} parent=11 // pred_region
          %s299 = ssub.s32 1024, 1024
          %300 = vsyncadd [#allocation11], %s299
          %s301 = sshll.u32 [#allocation10], 4
          %s302 = int_to_ptr.vmem [resolvable:$true] %s301
          %307 = dma.hbm_to_vmem [thread:$0]  %s6, 1024, %s302, [#allocation11], 128, 128, 8
        $region36: #{tpu_custom_call.1} parent=11 // pred_fallthru
          _
        // Predicated region
        $region37: #{tpu_custom_call.1} parent=11 // pred_check
          %p308 = pneg %p198
        $region38: #{tpu_custom_call.1} parent=11 // pred_check_branch
          %310 = sbr.rel (%p308) target = $region40
        $region39: #{tpu_custom_call.1} parent=11 // pred_region
          _
        $region40: #{tpu_custom_call.1} parent=11 // pred_fallthru
          _
      $region12: #{tpu_custom_call.1} parent=5 // pred_fallthru
        _
      %p311 = scmp.lt.s32.totalorder %s25, 8
      // Predicated region
      $region41: #{tpu_custom_call.1} parent=5 // pred_check
        %p312 = pneg %p311
      $region42: #{tpu_custom_call.1} parent=5 // pred_check_branch
        %314 = sbr.rel (%p312) target = $region44
      $region43: #{tpu_custom_call.1} parent=5 // pred_region
        // Predicated region
        $region45: #{tpu_custom_call.1} parent=43 // pred_check
          %p315 = pneg %p45
        $region46: #{tpu_custom_call.1} parent=43 // pred_check_branch
          %317 = sbr.rel (%p315) target = $region48
        $region47: #{tpu_custom_call.1} parent=43 // pred_region
          %s318 = sand.u32 %s35, 1
          %s319 = scalar_lea.sflag [#allocation5], %s318
          %s320 = sand.u32 %s35, 1
          %s321 = scalar_lea.vmem [#allocation4], %s320
          %s323 = ssub.s32 16, 16
          %324 = vsyncadd %s319, %s323
          %s325 = smul.addr %s25, 16
          %s326 = scalar_lea.hbm %s0, %s325
          %s328 = sshll.u32 %s321, 4
          %s329 = int_to_ptr.vmem [resolvable:$true] %s328
          %331 = dma.hbm_to_vmem [thread:$0]  %s326, 16, %s329, %s319
        $region48: #{tpu_custom_call.1} parent=43 // pred_fallthru
          _
      $region44: #{tpu_custom_call.1} parent=5 // pred_fallthru
        _
      %p332 = scmp.le.s32.totalorder 1, %s25
      %p333 = scmp.lt.s32.totalorder %s25, 9
      %p334 = pnand %p332, %p333
      %p335 = pneg %p334
      // Predicated region
      $region49: #{tpu_custom_call.1} parent=5 // pred_check
        _
      $region50: #{tpu_custom_call.1} parent=5 // pred_check_branch
        %337 = sbr.rel (%p334) target = $region52
      $region51: #{tpu_custom_call.1} parent=5 // pred_region
        %s338 = ssub.s32 %s25, 1
        %s339 = sand.u32 %s38, 1
        %s340 = scalar_lea.sflag [#allocation5], %s339
        %s341 = sand.u32 %s38, 1
        %s342 = scalar_lea.vmem [#allocation4], %s341
        // Predicated region
        $region53: #{tpu_custom_call.1} parent=51 // pred_check
          %p343 = pneg %p51
        $region54: #{tpu_custom_call.1} parent=51 // pred_check_branch
          %345 = sbr.rel (%p343) target = $region56
        $region55: #{tpu_custom_call.1} parent=51 // pred_region
          %346 = dma.done %s340, 16
        $region56: #{tpu_custom_call.1} parent=51 // pred_fallthru
          _
        // Predicated region
        $region57: #{tpu_custom_call.1} parent=51 // pred_check
          %p347 = pneg %p114
        $region58: #{tpu_custom_call.1} parent=51 // pred_check_branch
          %349 = sbr.rel (%p347) target = $region60
        $region59: #{tpu_custom_call.1} parent=51 // pred_region
          %350 = dma.done [#allocation8], 512
        $region60: #{tpu_custom_call.1} parent=51 // pred_fallthru
          _
        // Predicated region
        $region61: #{tpu_custom_call.1} parent=51 // pred_check
          %p351 = pneg %p135
        $region62: #{tpu_custom_call.1} parent=51 // pred_check_branch
          %353 = sbr.rel (%p351) target = $region64
        $region63: #{tpu_custom_call.1} parent=51 // pred_region
          %354 = dma.done [#allocation8], 2048
        $region64: #{tpu_custom_call.1} parent=51 // pred_fallthru
          _
        // Predicated region
        $region65: #{tpu_custom_call.1} parent=51 // pred_check
          %p355 = pneg %p177
        $region66: #{tpu_custom_call.1} parent=51 // pred_check_branch
          %357 = sbr.rel (%p355) target = $region68
        $region67: #{tpu_custom_call.1} parent=51 // pred_region
          %358 = dma.done [#allocation11], 1024
        $region68: #{tpu_custom_call.1} parent=51 // pred_fallthru
          _
        %s359 = sand.u32 %s38, 1
        %s360 = scalar_lea.sflag [#allocation5], %s359
        %s361 = sand.u32 %s38, 1
        %s362 = scalar_lea.vmem [#allocation4], %s361
        %p363 = pneg %p51
        %p364 = pneg %p48
        %p365 = pneg %p72
        %p366 = pneg %p69
        %p367 = pneg %p93
        %p368 = pneg %p90
        %p369 = pneg %p114
        %p370 = pneg %p111
        %p371 = pneg %p135
        %p372 = pneg %p132
        %p373 = pneg %p156
        %p374 = pneg %p153
        %p375 = pneg %p177
        %p376 = pneg %p174
        %p377 = pneg %p198
        %p378 = pneg %p195
        %p379 = pneg %p224
        %p380 = pneg %p221
        %s381 = sand.u32 %s211, 1
        %s382 = scalar_lea.sflag [#allocation6], %s381
        %s383 = sand.u32 %s211, 1
        %s384 = scalar_lea.vmem [#allocation12], %s383
        %p385 = pneg %p245
        %p386 = pneg %p242
        %p387 = scmp.eq.s32.totalorder %s30, 0
        // Predicated region
        $region69: #{tpu_custom_call.1} parent=51 // pred_check
          %p388 = pneg %p387
        $region70: #{tpu_custom_call.1} parent=51 // pred_check_branch
          %390 = sbr.rel (%p388) target = $region72
        $region71: #{tpu_custom_call.1} parent=51 // pred_region
          %v391 = vld [vmem:[%s1] sm:$0x1]
          %vm392 = vcmask 516096
          %393 = vst.msk [vmem:[#allocation2] sm:$0x1] %vm392, %v391
          %v394 = vld [vmem:[%s2] sm:$0x1]
          %395 = vst.msk [vmem:[#allocation3] sm:$0x1] %vm392, %v394
        $region72: #{tpu_custom_call.1} parent=51 // pred_fallthru
          _
        %v396 = vld [vmem:[%s342] sm:$0x1]
        %v397 = vld [vmem:[#allocation2] sm:$0x1]
        %v398 = vld [vmem:[#allocation3] sm:$0x1]
        %v399 = vld [vmem:[#allocation7] sm:$0xff]
        %v400 = vld [vmem:[#allocation7 + $0x8] sm:$0xff]
        %v401 = vld [vmem:[#allocation7 + $0x10] sm:$0xff]
        %v402 = vld [vmem:[#allocation7 + $0x18] sm:$0xff]
        %v403 = vld [vmem:[#allocation9] sm:$0xff]
        %v404 = vld [vmem:[#allocation9 + $0x8] sm:$0xff]
        %v405 = vld [vmem:[#allocation9 + $0x10] sm:$0xff]
        %v406 = vld [vmem:[#allocation9 + $0x18] sm:$0xff]
        %v407 = vld [vmem:[#allocation9 + $0x20] sm:$0xff]
        %v408 = vld [vmem:[#allocation9 + $0x28] sm:$0xff]
        %v409 = vld [vmem:[#allocation9 + $0x30] sm:$0xff]
        %v410 = vld [vmem:[#allocation9 + $0x38] sm:$0xff]
        %v411 = vld [vmem:[#allocation9 + $0x40] sm:$0xff]
        %v412 = vld [vmem:[#allocation9 + $0x48] sm:$0xff]
        %v413 = vld [vmem:[#allocation9 + $0x50] sm:$0xff]
        %v414 = vld [vmem:[#allocation9 + $0x58] sm:$0xff]
        %v415 = vld [vmem:[#allocation9 + $0x60] sm:$0xff]
        %v416 = vld [vmem:[#allocation9 + $0x68] sm:$0xff]
        %v417 = vld [vmem:[#allocation9 + $0x70] sm:$0xff]
        %v418 = vld [vmem:[#allocation9 + $0x78] sm:$0xff]
        %vm419 = vcmask 523264
        %v421 = vsel %vm419, %v397, 0
        %423 = vmatprep.subr.mxu0 %v404
        %424 = vmatpush1.msra.mxu0 %v403
        %425 = vmatprep.subr.mxu0 %v406
        %426 = vmatpush1.msra.mxu0 %v405
        %427 = vmatprep.subr.mxu0 %v408
        %428 = vmatpush1.msra.mxu0 %v407
        %429 = vmatprep.subr.mxu0 %v410
        %430 = vmatpush1.msra.mxu0 %v409
        %431 = vmatprep.subr.mxu0 %v412
        %432 = vmatpush1.msra.mxu0 %v411
        %433 = vmatprep.subr.mxu0 %v414
        %434 = vmatpush1.msra.mxu0 %v413
        %435 = vmatprep.subr.mxu0 %v416
        %436 = vmatpush1.msra.mxu0 %v415
        %437 = vmatprep.subr.mxu0 %v418
        %438 = vmatpush1.msra.mxu0 %v417
        %439 = vmatprep.subr.mxu0 0.0
        %440 = vmatpush1.msra.mxu0 0.0
        %441 = vmatprep.subr.mxu0 0.0
        %442 = vmatpush1.msra.mxu0 0.0
        %443 = vmatprep.subr.mxu0 0.0
        %444 = vmatpush1.msra.mxu0 0.0
        %445 = vmatprep.subr.mxu0 0.0
        %446 = vmatpush1.msra.mxu0 0.0
        %447 = vmatprep.subr.mxu0 0.0
        %448 = vmatpush1.msra.mxu0 0.0
        %449 = vmatprep.subr.mxu0 0.0
        %450 = vmatpush1.msra.mxu0 0.0
        %451 = vmatprep.subr.mxu0 0.0
        %452 = vmatpush1.msra.mxu0 0.0
        %453 = vmatprep.subr.mxu0 0.0
        %454 = vmatpush1.msra.mxu0 0.0
        %455 = vmatprep.subr.mxu0 0.0
        %456 = vmatpush1.msra.mxu0 0.0
        %457 = vmatprep.subr.mxu0 0.0
        %458 = vmatpush1.msra.mxu0 0.0
        %459 = vmatprep.subr.mxu0 0.0
        %460 = vmatpush1.msra.mxu0 0.0
        %461 = vmatprep.subr.mxu0 0.0
        %462 = vmatpush1.msra.mxu0 0.0
        %463 = vmatprep.subr.mxu0 0.0
        %464 = vmatpush1.msra.mxu0 0.0
        %465 = vmatprep.subr.mxu0 0.0
        %466 = vmatpush1.msra.mxu0 0.0
        %467 = vmatprep.subr.mxu0 0.0
        %468 = vmatpush1.msra.mxu0 0.0
        %469 = vmatprep.subr.mxu0 0.0
        %470 = vmatpush1.msra.mxu0 0.0
        %471 = vmatprep.subr.mxu0 0.0
        %472 = vmatpush1.msra.mxu0 0.0
        %473 = vmatprep.subr.mxu0 0.0
        %474 = vmatpush1.msra.mxu0 0.0
        %475 = vmatprep.subr.mxu0 0.0
        %476 = vmatpush1.msra.mxu0 0.0
        %477 = vmatprep.subr.mxu0 0.0
        %478 = vmatpush1.msra.mxu0 0.0
        %479 = vmatprep.subr.mxu0 0.0
        %480 = vmatpush1.msra.mxu0 0.0
        %481 = vmatprep.subr.mxu0 0.0
        %482 = vmatpush1.msra.mxu0 0.0
        %483 = vmatprep.subr.mxu0 0.0
        %484 = vmatpush1.msra.mxu0 0.0
        %485 = vmatprep.subr.mxu0 0.0
        %486 = vmatpush1.msra.mxu0 0.0
        %487 = vmatprep.mubr.f32.mxu0 0.0
        %488 = vmatmul.mubr.f32.gmra.mrb[0].mxu0 %v421
        %v489 = vpop.f32.mrb[0].mxu0
        %v490 = vadd.f32 0.0, %v489
        %v491 = vpop.f32.mrb[0].mxu0
        %v492 = vadd.f32 0.0, %v491
        %493 = vdwg.mxu0
        %vm494 = vcmask 130048
        %v496 = vsel %vm494, %v396, 0
        %498 = vmatprep.subr.mxu0 %v400
        %499 = vmatpush1.msra.mxu0 %v399
        %500 = vmatprep.subr.mxu0 %v402
        %501 = vmatpush1.msra.mxu0 %v401
        %502 = vmatprep.subr.mxu0 0.0
        %503 = vmatpush1.msra.mxu0 0.0
        %504 = vmatprep.subr.mxu0 0.0
        %505 = vmatpush1.msra.mxu0 0.0
        %506 = vmatprep.subr.mxu0 0.0
        %507 = vmatpush1.msra.mxu0 0.0
        %508 = vmatprep.subr.mxu0 0.0
        %509 = vmatpush1.msra.mxu0 0.0
        %510 = vmatprep.subr.mxu0 0.0
        %511 = vmatpush1.msra.mxu0 0.0
        %512 = vmatprep.subr.mxu0 0.0
        %513 = vmatpush1.msra.mxu0 0.0
        %514 = vmatprep.subr.mxu0 0.0
        %515 = vmatpush1.msra.mxu0 0.0
        %516 = vmatprep.subr.mxu0 0.0
        %517 = vmatpush1.msra.mxu0 0.0
        %518 = vmatprep.subr.mxu0 0.0
        %519 = vmatpush1.msra.mxu0 0.0
        %520 = vmatprep.subr.mxu0 0.0
        %521 = vmatpush1.msra.mxu0 0.0
        %522 = vmatprep.subr.mxu0 0.0
        %523 = vmatpush1.msra.mxu0 0.0
        %524 = vmatprep.subr.mxu0 0.0
        %525 = vmatpush1.msra.mxu0 0.0
        %526 = vmatprep.subr.mxu0 0.0
        %527 = vmatpush1.msra.mxu0 0.0
        %528 = vmatprep.subr.mxu0 0.0
        %529 = vmatpush1.msra.mxu0 0.0
        %530 = vmatprep.subr.mxu0 0.0
        %531 = vmatpush1.msra.mxu0 0.0
        %532 = vmatprep.subr.mxu0 0.0
        %533 = vmatpush1.msra.mxu0 0.0
        %534 = vmatprep.subr.mxu0 0.0
        %535 = vmatpush1.msra.mxu0 0.0
        %536 = vmatprep.subr.mxu0 0.0
        %537 = vmatpush1.msra.mxu0 0.0
        %538 = vmatprep.subr.mxu0 0.0
        %539 = vmatpush1.msra.mxu0 0.0
        %540 = vmatprep.subr.mxu0 0.0
        %541 = vmatpush1.msra.mxu0 0.0
        %542 = vmatprep.subr.mxu0 0.0
        %543 = vmatpush1.msra.mxu0 0.0
        %544 = vmatprep.subr.mxu0 0.0
        %545 = vmatpush1.msra.mxu0 0.0
        %546 = vmatprep.subr.mxu0 0.0
        %547 = vmatpush1.msra.mxu0 0.0
        %548 = vmatprep.subr.mxu0 0.0
        %549 = vmatpush1.msra.mxu0 0.0
        %550 = vmatprep.subr.mxu0 0.0
        %551 = vmatpush1.msra.mxu0 0.0
        %552 = vmatprep.subr.mxu0 0.0
        %553 = vmatpush1.msra.mxu0 0.0
        %554 = vmatprep.subr.mxu0 0.0
        %555 = vmatpush1.msra.mxu0 0.0
        %556 = vmatprep.subr.mxu0 0.0
        %557 = vmatpush1.msra.mxu0 0.0
        %558 = vmatprep.subr.mxu0 0.0
        %559 = vmatpush1.msra.mxu0 0.0
        %560 = vmatprep.subr.mxu0 0.0
        %561 = vmatpush1.msra.mxu0 0.0
        %562 = vmatprep.mubr.f32.mxu0 0.0
        %563 = vmatmul.mubr.f32.gmra.mrb[0].mxu0 %v496
        %v564 = vpop.f32.mrb[0].mxu0
        %v565 = vadd.f32 %v490, %v564
        %v566 = vpop.f32.mrb[0].mxu0
        %v567 = vadd.f32 %v492, %v566
        %568 = vdwg.mxu0
        %v569 = vld [vmem:[%s5] sm:$0x3]
        %v571 = vlaneseq
        %v572 = vshrl.u32 %v571, 7
        %v573 = vsub.s32 0, %v572
        %v574 = vrot.slane %v569, %v573
        %v575 = vlaneseq
        %v576 = vshrl.u32 %v575, 7
        %v577 = vsub.s32 1, %v576
        %v578 = vrot.slane %v569, %v577
        %v581 = vadd.f32 %v565, %v574
        %v582 = vadd.f32 %v567, %v578
        %v583 = vxor.u32 %v581, 2147483648
        %v584 = vmul.f32 %v583, 1.442695
        %v585 = vpow.pop %v584
        %v586 = vadd.f32 %v585, 1.0
        %v587 = vrcp.pop %v586
        %v588 = vmul.f32 1.0, %v587
        %v589 = vtanh.pop %v582
        %v590 = vxor.u32 %v582, 2147483648
        %v591 = vmul.f32 %v590, 1.442695
        %v592 = vpow.pop %v591
        %v593 = vadd.f32 %v592, 1.0
        %v594 = vrcp.pop %v593
        %v595 = vmul.f32 1.0, %v594
        %v597 = vlaneseq
        %v598 = vshrl.u32 %v597, 7
        %v599 = vsub.s32 0, %v598
        %v600 = vrot.slane %v398, %v599
        %601 = vrot.lane.b32.xlu0 %v600, 64
        %v602 = vpop.permute.xlu0 %601
        %v604 = vmul.f32 %v588, %v602
        %v605 = vmul.f32 %v588, %v589
        %607 = vrot.lane.b32.xlu0 %v605, 64
        %v608 = vpop.permute.xlu0 %607
        %v610 = vadd.f32 %v604, %v608
        %v611 = vtanh.pop %v610
        %v612 = vmul.f32 %v595, %v611
        %614 = vrot.lane.b32.xlu0 %v612, 64
        %v615 = vpop.permute.xlu0 %614
        %vm617 = vcmask 516096
        %618 = vst.msk [vmem:[#allocation2] sm:$0x1] %vm617, %v615
        %620 = vrot.lane.b32.xlu0 %v610, 64
        %v621 = vpop.permute.xlu0 %620
        %623 = vst.msk [vmem:[#allocation3] sm:$0x1] %vm617, %v621
        %v624 = vld [vmem:[#allocation10] sm:$0xff]
        %v625 = vld [vmem:[#allocation10 + $0x8] sm:$0xff]
        %v626 = vld [vmem:[#allocation10 + $0x10] sm:$0xff]
        %v627 = vld [vmem:[#allocation10 + $0x18] sm:$0xff]
        %v628 = vld [vmem:[#allocation10 + $0x20] sm:$0xff]
        %v629 = vld [vmem:[#allocation10 + $0x28] sm:$0xff]
        %v630 = vld [vmem:[#allocation10 + $0x30] sm:$0xff]
        %v631 = vld [vmem:[#allocation10 + $0x38] sm:$0xff]
        %v632 = vld [vmem:[%s7] sm:$0x1]
        %v633 = vsel %vm419, %v615, 0
        %635 = vmatprep.subr.mxu0 0.0
        %636 = vmatpush1.msra.mxu0 %v624
        %637 = vmatprep.subr.mxu0 0.0
        %638 = vmatpush1.msra.mxu0 %v625
        %639 = vmatprep.subr.mxu0 0.0
        %640 = vmatpush1.msra.mxu0 %v626
        %641 = vmatprep.subr.mxu0 0.0
        %642 = vmatpush1.msra.mxu0 %v627
        %643 = vmatprep.subr.mxu0 0.0
        %644 = vmatpush1.msra.mxu0 %v628
        %645 = vmatprep.subr.mxu0 0.0
        %646 = vmatpush1.msra.mxu0 %v629
        %647 = vmatprep.subr.mxu0 0.0
        %648 = vmatpush1.msra.mxu0 %v630
        %649 = vmatprep.subr.mxu0 0.0
        %650 = vmatpush1.msra.mxu0 %v631
        %651 = vmatprep.subr.mxu0 0.0
        %652 = vmatpush1.msra.mxu0 0.0
        %653 = vmatprep.subr.mxu0 0.0
        %654 = vmatpush1.msra.mxu0 0.0
        %655 = vmatprep.subr.mxu0 0.0
        %656 = vmatpush1.msra.mxu0 0.0
        %657 = vmatprep.subr.mxu0 0.0
        %658 = vmatpush1.msra.mxu0 0.0
        %659 = vmatprep.subr.mxu0 0.0
        %660 = vmatpush1.msra.mxu0 0.0
        %661 = vmatprep.subr.mxu0 0.0
        %662 = vmatpush1.msra.mxu0 0.0
        %663 = vmatprep.subr.mxu0 0.0
        %664 = vmatpush1.msra.mxu0 0.0
        %665 = vmatprep.subr.mxu0 0.0
        %666 = vmatpush1.msra.mxu0 0.0
        %667 = vmatprep.subr.mxu0 0.0
        %668 = vmatpush1.msra.mxu0 0.0
        %669 = vmatprep.subr.mxu0 0.0
        %670 = vmatpush1.msra.mxu0 0.0
        %671 = vmatprep.subr.mxu0 0.0
        %672 = vmatpush1.msra.mxu0 0.0
        %673 = vmatprep.subr.mxu0 0.0
        %674 = vmatpush1.msra.mxu0 0.0
        %675 = vmatprep.subr.mxu0 0.0
        %676 = vmatpush1.msra.mxu0 0.0
        %677 = vmatprep.subr.mxu0 0.0
        %678 = vmatpush1.msra.mxu0 0.0
        %679 = vmatprep.subr.mxu0 0.0
        %680 = vmatpush1.msra.mxu0 0.0
        %681 = vmatprep.subr.mxu0 0.0
        %682 = vmatpush1.msra.mxu0 0.0
        %683 = vmatprep.subr.mxu0 0.0
        %684 = vmatpush1.msra.mxu0 0.0
        %685 = vmatprep.subr.mxu0 0.0
        %686 = vmatpush1.msra.mxu0 0.0
        %687 = vmatprep.subr.mxu0 0.0
        %688 = vmatpush1.msra.mxu0 0.0
        %689 = vmatprep.subr.mxu0 0.0
        %690 = vmatpush1.msra.mxu0 0.0
        %691 = vmatprep.subr.mxu0 0.0
        %692 = vmatpush1.msra.mxu0 0.0
        %693 = vmatprep.subr.mxu0 0.0
        %694 = vmatpush1.msra.mxu0 0.0
        %695 = vmatprep.subr.mxu0 0.0
        %696 = vmatpush1.msra.mxu0 0.0
        %697 = vmatprep.subr.mxu0 0.0
        %698 = vmatpush1.msra.mxu0 0.0
        %699 = vmatprep.mubr.f32.mxu0 0.0
        %700 = vmatmul.mubr.f32.gmra.mrb[0].mxu0 %v633
        %v701 = vpop.f32.mrb[0].mxu0
        %v702 = vadd.f32 %v632, %v701
        %v703 = vpop.f32.mrb[0].mxu0
        %704 = vdwg.mxu0
        %v705 = vxor.u32 %v702, 2147483648
        %v706 = vmul.f32 %v705, 1.442695
        %v707 = vpow.pop %v706
        %v708 = vadd.f32 %v707, 1.0
        %v709 = vrcp.pop %v708
        %v710 = vmul.f32 1.0, %v709
        %711 = vst [vmem:[%s384] sm:$0x1] %v710
        %p712 = scmp.eq.s32.totalorder %s30, 7
        // Predicated region
        $region73: #{tpu_custom_call.1} parent=51 // pred_check
          %p713 = pneg %p712
        $region74: #{tpu_custom_call.1} parent=51 // pred_check_branch
          %715 = sbr.rel (%p713) target = $region76
        $region75: #{tpu_custom_call.1} parent=51 // pred_region
          %716 = vst.msk [vmem:[#allocation13] sm:$0x1] %vm617, %v615
          %vm717 = vcmask 1040896
          %718 = vst.msk [vmem:[#allocation13] sm:$0x1] %vm717, %v610
        $region76: #{tpu_custom_call.1} parent=51 // pred_fallthru
          _
        %s719 = sand.u32 %s211, 1
        %s720 = scalar_lea.sflag [#allocation6], %s719
        %s721 = sand.u32 %s211, 1
        %s722 = scalar_lea.vmem [#allocation12], %s721
        // Predicated region
        $region77: #{tpu_custom_call.1} parent=51 // pred_check
          %p723 = pneg %p221
        $region78: #{tpu_custom_call.1} parent=51 // pred_check_branch
          %725 = sbr.rel (%p723) target = $region80
        $region79: #{tpu_custom_call.1} parent=51 // pred_region
          %s727 = ssub.s32 16, 16
          %728 = vsyncadd %s720, %s727
          %s729 = smul.addr %s30, 16
          %s730 = scalar_lea.hbm %s8, %s729
          %s732 = sshll.u32 %s722, 4
          %s733 = int_to_ptr.vmem [resolvable:$true] %s732
          %735 = dma.vmem_to_hbm [thread:$0]  %s733, 16, %s730, %s720
        $region80: #{tpu_custom_call.1} parent=51 // pred_fallthru
          _
        // Predicated region
        $region81: #{tpu_custom_call.1} parent=51 // pred_check
          %p736 = pneg %p242
        $region82: #{tpu_custom_call.1} parent=51 // pred_check_branch
          %738 = sbr.rel (%p736) target = $region84
        $region83: #{tpu_custom_call.1} parent=51 // pred_region
          %s740 = ssub.s32 16, 16
          %741 = vsyncadd [#allocation14], %s740
          %s743 = sshll.u32 [#allocation13], 4
          %s744 = int_to_ptr.vmem [resolvable:$true] %s743
          %746 = dma.vmem_to_hbm [thread:$0]  %s744, 16, %s9, [#allocation14]
        $region84: #{tpu_custom_call.1} parent=51 // pred_fallthru
          _
        // Predicated region
        $region85: #{tpu_custom_call.1} parent=51 // pred_check
          %p747 = pneg %p242
        $region86: #{tpu_custom_call.1} parent=51 // pred_check_branch
          %749 = sbr.rel (%p747) target = $region88
        $region87: #{tpu_custom_call.1} parent=51 // pred_region
          %750 = dma.done [#allocation14], 16
        $region88: #{tpu_custom_call.1} parent=51 // pred_fallthru
          _
      $region52: #{tpu_custom_call.1} parent=5 // pred_fallthru
        _
      %p751 = scmp.le.s32.totalorder 2, %s25
      // Predicated region
      $region89: #{tpu_custom_call.1} parent=5 // pred_check
        %p752 = pneg %p751
      $region90: #{tpu_custom_call.1} parent=5 // pred_check_branch
        %754 = sbr.rel (%p752) target = $region92
      $region91: #{tpu_custom_call.1} parent=5 // pred_region
        %s755 = ssub.s32 %s25, 2
        // Predicated region
        $region93: #{tpu_custom_call.1} parent=91 // pred_check
          %p756 = pneg %p227
        $region94: #{tpu_custom_call.1} parent=91 // pred_check_branch
          %758 = sbr.rel (%p756) target = $region96
        $region95: #{tpu_custom_call.1} parent=91 // pred_region
          %s759 = sand.u32 %s212, 1
          %s760 = scalar_lea.sflag [#allocation6], %s759
          %s761 = sand.u32 %s212, 1
          %s762 = scalar_lea.vmem [#allocation12], %s761
          %763 = dma.done %s760, 16
        $region96: #{tpu_custom_call.1} parent=91 // pred_fallthru
          _
      $region92: #{tpu_custom_call.1} parent=5 // pred_fallthru
        _
    $region6: #{tpu_custom_call.1} parent=1 // loop_footer
      %s29 = sadd.s32 1, %s25
    $region7: #{tpu_custom_call.1} parent=1 // loop_footer_branch
      %24 = sbr.rel target = $region3
    $region8: #{tpu_custom_call.1} parent=1 // loop_exit
      _
    %764 = vsyncpa [#allocation5], 1
    %s765 = scalar_lea.sflag [#allocation5], 1
    %766 = vsyncpa %s765, 1
    %767 = vsyncpa [#allocation8], 1
    %768 = vsyncpa [#allocation11], 1
    %769 = vsyncpa [#allocation6], 1
    %s770 = scalar_lea.sflag [#allocation6], 1
    %771 = vsyncpa %s770, 1
    %772 = vsyncpa [#allocation14], 1

</llo_original>
